<compile_context>
chip_gen: v7x
topology: tpu7x:2x2x1
jax: 0.10.0
libtpu: 0.0.40
codegen_flags: <defaults>
</compile_context>

<pallas_src>
import math
import functools

import jax
import jax.numpy as jnp
from jax.experimental import pallas as pl
from jax.experimental.pallas import tpu as pltpu


# ----------------------------- config -----------------------------
class Config:
    d_embed = 32
    n_heads = 4
    d_k = 8
    d_v = 8


# ----------------------------- kernel -----------------------------
def _sdpa_kernel(q_ref, k_ref, v_ref, mask_ref, ctx_ref, attn_ref, *, scale):
    # Per-(batch, head) tiles: q/k (S, d_k), v (S, d_v), mask (S, S) int8.
    q = q_ref[...] * scale                      # fold 1/sqrt(d_k) into Q once
    k = k_ref[...]
    v = v_ref[...]
    masked = mask_ref[...] != 0                 # nonzero == masked position

    # scores = (Q/sqrt(d_k)) @ K^T : contract both operands on their last axis
    # (no transpose / XLU relayout of K).
    scores = jax.lax.dot_general(
        q, k, (((1,), (1,)), ((), ())), preferred_element_type=jnp.float32)
    scores = jnp.where(masked, -1e9, scores)    # masked_fill_

    # Row softmax (max-subtracted), exact division for parity with torch.
    m = jnp.max(scores, axis=-1, keepdims=True)
    e = jnp.exp(scores - m)
    attn = e / jnp.sum(e, axis=-1, keepdims=True)

    ctx = jnp.dot(attn, v, preferred_element_type=jnp.float32)

    ctx_ref[...] = ctx.astype(ctx_ref.dtype)
    attn_ref[...] = attn.astype(attn_ref.dtype)


# ----------------------------- wrapper -----------------------------
def scaled_dot_product_attention(Q, K, V, attn_mask, d_k):
    """Q, K: (B, H, S, d_k); V: (B, H, S, d_v); attn_mask: (B, 1 or H, S, S) bool/int.

    Returns (context (B, H, S, d_v), attn (B, H, S, S)) — same as the PyTorch module.
    """
    B, H, S, Dk = Q.shape
    Dv = V.shape[-1]

    # Tiny (B, mask_h, S, S) int8 mask; NOT broadcast over heads on the host.
    mask = attn_mask.astype(jnp.int8)
    mask_h = mask.shape[1]
    mask_idx = (lambda b, h: (b, 0, 0, 0)) if mask_h == 1 else (lambda b, h: (b, h, 0, 0))

    flops = 2 * B * H * S * S * (Dk + Dv)
    bytes_accessed = ((Q.size + K.size + V.size) * Q.dtype.itemsize
                      + mask.size                       # int8
                      + (B * H * S * Dv + B * H * S * S) * 4)

    ctx, attn = pl.pallas_call(
        functools.partial(_sdpa_kernel, scale=1.0 / math.sqrt(d_k)),
        grid=(B, H),
        in_specs=[
            pl.BlockSpec((None, None, S, Dk), lambda b, h: (b, h, 0, 0)),  # Q
            pl.BlockSpec((None, None, S, Dk), lambda b, h: (b, h, 0, 0)),  # K
            pl.BlockSpec((None, None, S, Dv), lambda b, h: (b, h, 0, 0)),  # V
            pl.BlockSpec((None, None, S, S), mask_idx),                    # mask (head 0 reused)
        ],
        out_specs=(
            pl.BlockSpec((None, None, S, Dv), lambda b, h: (b, h, 0, 0)),
            pl.BlockSpec((None, None, S, S), lambda b, h: (b, h, 0, 0)),
        ),
        out_shape=(
            jax.ShapeDtypeStruct((B, H, S, Dv), jnp.float32),
            jax.ShapeDtypeStruct((B, H, S, S), jnp.float32),
        ),
        compiler_params=pltpu.CompilerParams(
            dimension_semantics=("parallel", "parallel")),
        cost_estimate=pl.CostEstimate(
            flops=flops,
            transcendentals=B * H * S * S,
            bytes_accessed=bytes_accessed),
    )(Q, K, V, mask)
    return ctx, attn


# ------------------------- pure-JAX reference -------------------------
def reference_sdpa(Q, K, V, attn_mask, d_k):
    scale = 1.0 / math.sqrt(d_k)
    scores = jnp.einsum("bhqd,bhkd->bhqk", Q, K) * scale
    scores = jnp.where(jnp.broadcast_to(attn_mask, scores.shape), -1e9, scores)
    attn = jax.nn.softmax(scores, axis=-1)
    ctx = jnp.einsum("bhqk,bhkd->bhqd", attn, V)
    return ctx, attn


# ----------------------------- main -----------------------------
if __name__ == "__main__":
    cfg = Config()
    B, S = 2, 8
    H, dk, dv = cfg.n_heads, cfg.d_k, cfg.d_v

    key = jax.random.PRNGKey(0)
    kq, kk, kv, km = jax.random.split(key, 4)

    Q = jax.random.normal(kq, (B, H, S, dk), jnp.float32)
    K = jax.random.normal(kk, (B, H, S, dk), jnp.float32)
    V = jax.random.normal(kv, (B, H, S, dv), jnp.float32)
    # boolean mask broadcast over heads; True == masked position
    attn_mask = jax.random.bernoulli(km, 0.2, (B, 1, S, S))

    ctx, attn = scaled_dot_product_attention(Q, K, V, attn_mask, dk)
    ctx = jax.block_until_ready(ctx)
    attn = jax.block_until_ready(attn)

    ref_ctx, ref_attn = reference_sdpa(Q, K, V, attn_mask, dk)
    assert ctx.shape == (B, H, S, dv) and attn.shape == (B, H, S, S)
    assert jnp.allclose(ctx, ref_ctx, atol=1e-2, rtol=1e-2)
    assert jnp.allclose(attn, ref_attn, atol=1e-2, rtol=1e-2)
    print("KERNEL_OK")
</pallas_src>

<mosaic_0001>
module attributes {stable_mosaic.version = 11 : i64} {
  func.func @_sdpa_kernel(%arg0: i32, %arg1: i32, %arg2: memref<1x1x8x8xf32, #tpu.memory_space<vmem>>, %arg3: memref<1x1x8x8xf32, #tpu.memory_space<vmem>>, %arg4: memref<1x1x8x8xf32, #tpu.memory_space<vmem>>, %arg5: memref<1x1x8x8xi8, #tpu.memory_space<vmem>>, %arg6: memref<1x1x8x8xf32, #tpu.memory_space<vmem>>, %arg7: memref<1x1x8x8xf32, #tpu.memory_space<vmem>>) attributes {dimension_semantics = [#tpu.dimension_semantics<parallel>, #tpu.dimension_semantics<parallel>], iteration_bounds = array<i64: 2, 4>, scalar_prefetch = 0 : i64, scratch_operands = 0 : i64, tpu.core_type = #tpu.core_type<tc>, window_params = [{transform_indices = @transform_0, window_bounds = array<i64: 1, 1, 8, 8>}, {transform_indices = @transform_1, window_bounds = array<i64: 1, 1, 8, 8>}, {transform_indices = @transform_2, window_bounds = array<i64: 1, 1, 8, 8>}, {transform_indices = @transform_3, window_bounds = array<i64: 1, 1, 8, 8>}, {transform_indices = @transform_4, window_bounds = array<i64: 1, 1, 8, 8>}, {transform_indices = @transform_5, window_bounds = array<i64: 1, 1, 8, 8>}]} {
    %c0 = arith.constant 0 : index
    %c0_0 = arith.constant 0 : index
    %c0_1 = arith.constant 0 : index
    %c0_2 = arith.constant 0 : index
    %0 = vector.load %arg2[%c0, %c0_0, %c0_1, %c0_2] : memref<1x1x8x8xf32, #tpu.memory_space<vmem>>, vector<1x1x8x8xf32>
    %1 = vector.shape_cast %0 : vector<1x1x8x8xf32> to vector<8x8xf32>
    %cst = arith.constant 0.353553385 : f32
    %2 = vector.broadcast %cst : f32 to vector<8x8xf32>
    %3 = arith.mulf %1, %2 : vector<8x8xf32>
    %c0_3 = arith.constant 0 : index
    %c0_4 = arith.constant 0 : index
    %c0_5 = arith.constant 0 : index
    %c0_6 = arith.constant 0 : index
    %4 = vector.load %arg3[%c0_3, %c0_4, %c0_5, %c0_6] : memref<1x1x8x8xf32, #tpu.memory_space<vmem>>, vector<1x1x8x8xf32>
    %5 = vector.shape_cast %4 : vector<1x1x8x8xf32> to vector<8x8xf32>
    %c0_7 = arith.constant 0 : index
    %c0_8 = arith.constant 0 : index
    %c0_9 = arith.constant 0 : index
    %c0_10 = arith.constant 0 : index
    %6 = vector.load %arg4[%c0_7, %c0_8, %c0_9, %c0_10] : memref<1x1x8x8xf32, #tpu.memory_space<vmem>>, vector<1x1x8x8xf32>
    %7 = vector.shape_cast %6 : vector<1x1x8x8xf32> to vector<8x8xf32>
    %c0_11 = arith.constant 0 : index
    %c0_12 = arith.constant 0 : index
    %c0_13 = arith.constant 0 : index
    %c0_14 = arith.constant 0 : index
    %8 = vector.load %arg5[%c0_11, %c0_12, %c0_13, %c0_14] : memref<1x1x8x8xi8, #tpu.memory_space<vmem>>, vector<1x1x8x8xi8>
    %9 = vector.shape_cast %8 : vector<1x1x8x8xi8> to vector<8x8xi8>
    %c0_i8 = arith.constant 0 : i8
    %10 = vector.broadcast %c0_i8 : i8 to vector<8x8xi8>
    %11 = arith.cmpi ne, %9, %10 : vector<8x8xi8>
    %cst_15 = arith.constant dense<0.000000e+00> : vector<8x8xf32>
    %12 = tpu.matmul %3, %5, %cst_15 {dimension_numbers = #tpu.dot_dimension_numbers<[1], [1], [0], [0], [0, 0, 1, 0], [], []>} : vector<8x8xf32>, vector<8x8xf32>, vector<8x8xf32> -> vector<8x8xf32>
    %cst_16 = arith.constant -1.000000e+09 : f32
    %13 = vector.broadcast %cst_16 : f32 to vector<8x8xf32>
    %14 = arith.select %11, %13, %12 : vector<8x8xi1>, vector<8x8xf32>
    %cst_17 = arith.constant dense<0xFF800000> : vector<8xf32>
    %15 = vector.multi_reduction <maximumf>, %14, %cst_17 [1] : vector<8x8xf32> to vector<8xf32>
    %16 = vector.shape_cast %15 : vector<8xf32> to vector<8x1xf32>
    %17 = vector.broadcast %16 : vector<8x1xf32> to vector<8x8xf32>
    %18 = arith.subf %14, %17 : vector<8x8xf32>
    %19 = math.exp %18 : vector<8x8xf32>
    %cst_18 = arith.constant dense<0.000000e+00> : vector<8xf32>
    %20 = vector.multi_reduction <add>, %19, %cst_18 [1] : vector<8x8xf32> to vector<8xf32>
    %21 = vector.shape_cast %20 : vector<8xf32> to vector<8x1xf32>
    %22 = vector.broadcast %21 : vector<8x1xf32> to vector<8x8xf32>
    %23 = arith.divf %19, %22 : vector<8x8xf32>
    %cst_19 = arith.constant dense<0.000000e+00> : vector<8x8xf32>
    %24 = tpu.matmul %23, %7, %cst_19 {dimension_numbers = #tpu.dot_dimension_numbers<[1], [0], [0], [1], [0, 0, 1, 1], [], []>} : vector<8x8xf32>, vector<8x8xf32>, vector<8x8xf32> -> vector<8x8xf32>
    %c0_20 = arith.constant 0 : index
    %c0_21 = arith.constant 0 : index
    %c0_22 = arith.constant 0 : index
    %c0_23 = arith.constant 0 : index
    %25 = vector.load %arg6[%c0_20, %c0_21, %c0_22, %c0_23] : memref<1x1x8x8xf32, #tpu.memory_space<vmem>>, vector<1x1x8x8xf32>
    %26 = vector.shape_cast %25 : vector<1x1x8x8xf32> to vector<8x8xf32>
    %27 = vector.shape_cast %24 : vector<8x8xf32> to vector<1x1x8x8xf32>
    tpu.vector_store %arg6[%c0_20, %c0_21, %c0_22, %c0_23], %27 {strides = array<i32>} : memref<1x1x8x8xf32, #tpu.memory_space<vmem>>, vector<1x1x8x8xf32>,
    %c0_24 = arith.constant 0 : index
    %c0_25 = arith.constant 0 : index
    %c0_26 = arith.constant 0 : index
    %c0_27 = arith.constant 0 : index
    %28 = vector.load %arg7[%c0_24, %c0_25, %c0_26, %c0_27] : memref<1x1x8x8xf32, #tpu.memory_space<vmem>>, vector<1x1x8x8xf32>
    %29 = vector.shape_cast %28 : vector<1x1x8x8xf32> to vector<8x8xf32>
    %30 = vector.shape_cast %23 : vector<8x8xf32> to vector<1x1x8x8xf32>
    tpu.vector_store %arg7[%c0_24, %c0_25, %c0_26, %c0_27], %30 {strides = array<i32>} : memref<1x1x8x8xf32, #tpu.memory_space<vmem>>, vector<1x1x8x8xf32>,
    return
  }
  func.func @transform_0(%arg0: i32, %arg1: i32) -> (i32, i32, i32, i32) {
    %c0_i32 = arith.constant 0 : i32
    %c0_i32_0 = arith.constant 0 : i32
    %c0_i32_1 = arith.constant 0 : i32
    return %arg0, %arg1, %c0_i32, %c0_i32_0 : i32, i32, i32, i32
  }
  func.func @transform_1(%arg0: i32, %arg1: i32) -> (i32, i32, i32, i32) {
    %c0_i32 = arith.constant 0 : i32
    %c0_i32_0 = arith.constant 0 : i32
    %c0_i32_1 = arith.constant 0 : i32
    return %arg0, %arg1, %c0_i32, %c0_i32_0 : i32, i32, i32, i32
  }
  func.func @transform_2(%arg0: i32, %arg1: i32) -> (i32, i32, i32, i32) {
    %c0_i32 = arith.constant 0 : i32
    %c0_i32_0 = arith.constant 0 : i32
    %c0_i32_1 = arith.constant 0 : i32
    return %arg0, %arg1, %c0_i32, %c0_i32_0 : i32, i32, i32, i32
  }
  func.func @transform_3(%arg0: i32, %arg1: i32) -> (i32, i32, i32, i32) {
    %c0_i32 = arith.constant 0 : i32
    %c0_i32_0 = arith.constant 0 : i32
    %c0_i32_1 = arith.constant 0 : i32
    %c0_i32_2 = arith.constant 0 : i32
    return %arg0, %c0_i32, %c0_i32_0, %c0_i32_1 : i32, i32, i32, i32
  }
  func.func @transform_4(%arg0: i32, %arg1: i32) -> (i32, i32, i32, i32) {
    %c0_i32 = arith.constant 0 : i32
    %c0_i32_0 = arith.constant 0 : i32
    %c0_i32_1 = arith.constant 0 : i32
    return %arg0, %arg1, %c0_i32, %c0_i32_0 : i32, i32, i32, i32
  }
  func.func @transform_5(%arg0: i32, %arg1: i32) -> (i32, i32, i32, i32) {
    %c0_i32 = arith.constant 0 : i32
    %c0_i32_0 = arith.constant 0 : i32
    %c0_i32_1 = arith.constant 0 : i32
    return %arg0, %arg1, %c0_i32, %c0_i32_0 : i32, i32, i32, i32
  }
}

</mosaic_0001>

<llo_original>
// kernel: tpu_custom_call.1
$region0: #{tpu_custom_call.1}
  #allocation0 [shape = 'u32[]', space=smem, size = 0x4, offset = 0x4, fixed_abs, tag = 'smem constant byte address 0x4 - core index']
  #allocation1 [shape = 'u32[144,128]{1,0:T(1,128)}', space=vmem, size = 0x12000, scoped, tag = 'internal scratch']
  %s0 = inlined_call_operand.hbm [shape: f32[2,4,8,8], index: 0, kind: input, shape index: {}]
  %s1 = inlined_call_operand.hbm [shape: f32[2,4,8,8], index: 1, kind: input, shape index: {}]
  %s2 = inlined_call_operand.hbm [shape: f32[2,4,8,8], index: 2, kind: input, shape index: {}]
  %s3 = inlined_call_operand.vmem [shape: s8[2,1,8,8], index: 3, kind: input, shape index: {}]
  %s4 = inlined_call_operand.hbm [shape: f32[2,4,8,8], index: 4, kind: output, shape index: {0}]
  %s5 = inlined_call_operand.hbm [shape: f32[2,4,8,8], index: 5, kind: output, shape index: {1}]
  %6 = xla_tuple %s4, %s5
  %s7 = sld [smem:[#allocation0]]
  $region69: #{tpu_custom_call.1} parent=0
    _
  %s9 = ssub.s32 1, %s7
  %s10 = scalar_select 0, %s9, %s7
  $region1: #{tpu_custom_call.1} parent=0
    #allocation2 [shape = 'u8[8192]{0}', space=vmem, size = 0x2000, scoped, tag = 'input window, operand 0']
    #allocation3 [shape = 's32[2]{0}', space=sflag, size = 0x8, scoped, tag = 'scoped memory for tpu_custom_call.1']
    #allocation4 [shape = 's32[2]{0}', space=sflag, size = 0x8, scoped, tag = 'scoped memory for tpu_custom_call.1']
    #allocation5 [shape = 'u8[8192]{0}', space=vmem, size = 0x2000, scoped, tag = 'input window, operand 1']
    #allocation6 [shape = 's32[2]{0}', space=sflag, size = 0x8, scoped, tag = 'scoped memory for tpu_custom_call.1']
    #allocation7 [shape = 'u8[8192]{0}', space=vmem, size = 0x2000, scoped, tag = 'input window, operand 2']
    #allocation8 [shape = 'u8[8192]{0}', space=vmem, size = 0x2000, scoped, tag = 'output window, operand 0']
    #allocation9 [shape = 'u8[8192]{0}', space=vmem, size = 0x2000, scoped, tag = 'output window, operand 1']
    #allocation10 [shape = 's32[2]{0}', space=sflag, size = 0x8, scoped, tag = 'scoped memory for tpu_custom_call.1']
    %11 = vsyncpa [#allocation3], 0
    %s12 = scalar_lea.sflag [#allocation3], 1
    %13 = vsyncpa %s12, 0
    %14 = vsyncpa [#allocation6], 0
    %s15 = scalar_lea.sflag [#allocation6], 1
    %16 = vsyncpa %s15, 0
    %17 = vsyncpa [#allocation4], 0
    %s18 = scalar_lea.sflag [#allocation4], 1
    %19 = vsyncpa %s18, 0
    %20 = vsyncpa [#allocation10], 0
    %s21 = scalar_lea.sflag [#allocation10], 1
    %22 = vsyncpa %s21, 0
    loop: start=0, step=1, limit=10
    $region2: #{tpu_custom_call.1} parent=1 // loop_pre_header
      _
    $region3: #{tpu_custom_call.1} parent=1 // loop_header
      %s24 = sphi 0, %s28
      %p25 = scmp.ge.s32.totalorder %s24, 10
      %s31 = sphi 0, %s43
      %s32 = sphi 0, %s39
      %s33 = sphi 0, %s31
      %s34 = sphi 0, %s32
      %s35 = sphi 0, %s33
      %s36 = sphi 0, %s34
      %s48 = sphi 0, %s50
      %s51 = sphi 0, %s48
      %s52 = sphi 0, %s51
      %s68 = sphi 0, %s52
      %s76 = sphi 0, %s78
      %s79 = sphi 0, %s76
      %s80 = sphi 0, %s79
      %s96 = sphi 0, %s80
      %s104 = sphi 0, %s106
      %s107 = sphi 0, %s104
      %s108 = sphi 0, %s107
      %s124 = sphi 0, %s108
      %s130 = sphi 0, %s132
      %s133 = sphi 0, %s130
      %s134 = sphi 0, %s133
      %s150 = sphi 0, %s134
      %s158 = sphi 0, %s160
      %s161 = sphi 0, %s158
      %s162 = sphi 0, %s161
      %s178 = sphi 0, %s162
      %s186 = sphi 0, %s188
      %s189 = sphi 0, %s186
      %s190 = sphi 0, %s189
      %s206 = sphi 0, %s190
    $region4: #{tpu_custom_call.1} parent=1 // loop_header_branch
      %27 = sbr.rel (%p25) target = $region8
    $region5: #{tpu_custom_call.1} parent=1 // loop_body
      %s29 = ssub.s32 %s24, 1
      %s30 = ssub.s32 %s24, 2
      %s37 = sadd.s32 1, %s32
      %p38 = scmp.ge.s32.totalorder %s37, 4
      %s39 = scalar_select %p38, 0, %s37
      %s40 = sadd.s32 1, %s31
      %s41 = scalar_select %p38, %s40, %s31
      %p42 = scmp.ge.s32.totalorder %s41, 2
      %s43 = scalar_select %p42, 0, %s41
      %s44 = ssub.s32 %s31, %s43
      %s45 = ssub.s32 %s32, %s39
      %s46 = sor.u32 %s44, %s45
      %p47 = scmp.eq.s32.totalorder %s46, 0
      %s49 = sadd.s32 %s48, 1
      %s50 = scalar_select %p47, %s48, %s49
      %p53 = pneg %p47
      %p54 = scmp.eq.s32.totalorder %s24, 7
      %p55 = por %p53, %p54
      %p56 = scmp.ne.s32.totalorder %s48, %s51
      %p57 = scmp.eq.s32.totalorder %s24, 0
      %p58 = por %p56, %p57
      %p59 = scmp.ne.s32.totalorder %s48, %s51
      %p60 = scmp.eq.s32.totalorder %s29, 7
      %p61 = por %p59, %p60
      %p62 = scmp.ne.s32.totalorder %s51, %s52
      %p63 = scmp.eq.s32.totalorder %s29, 0
      %p64 = por %p62, %p63
      %p65 = scmp.ne.s32.totalorder %s51, %s52
      %p66 = scmp.eq.s32.totalorder %s30, 7
      %p67 = por %p65, %p66
      %p69 = scmp.ne.s32.totalorder %s52, %s68
      %p70 = scmp.eq.s32.totalorder %s30, 0
      %p71 = por %p69, %p70
      %s72 = ssub.s32 %s31, %s43
      %s73 = ssub.s32 %s32, %s39
      %s74 = sor.u32 %s72, %s73
      %p75 = scmp.eq.s32.totalorder %s74, 0
      %s77 = sadd.s32 %s76, 1
      %s78 = scalar_select %p75, %s76, %s77
      %p81 = pneg %p75
      %p82 = scmp.eq.s32.totalorder %s24, 7
      %p83 = por %p81, %p82
      %p84 = scmp.ne.s32.totalorder %s76, %s79
      %p85 = scmp.eq.s32.totalorder %s24, 0
      %p86 = por %p84, %p85
      %p87 = scmp.ne.s32.totalorder %s76, %s79
      %p88 = scmp.eq.s32.totalorder %s29, 7
      %p89 = por %p87, %p88
      %p90 = scmp.ne.s32.totalorder %s79, %s80
      %p91 = scmp.eq.s32.totalorder %s29, 0
      %p92 = por %p90, %p91
      %p93 = scmp.ne.s32.totalorder %s79, %s80
      %p94 = scmp.eq.s32.totalorder %s30, 7
      %p95 = por %p93, %p94
      %p97 = scmp.ne.s32.totalorder %s80, %s96
      %p98 = scmp.eq.s32.totalorder %s30, 0
      %p99 = por %p97, %p98
      %s100 = ssub.s32 %s31, %s43
      %s101 = ssub.s32 %s32, %s39
      %s102 = sor.u32 %s100, %s101
      %p103 = scmp.eq.s32.totalorder %s102, 0
      %s105 = sadd.s32 %s104, 1
      %s106 = scalar_select %p103, %s104, %s105
      %p109 = pneg %p103
      %p110 = scmp.eq.s32.totalorder %s24, 7
      %p111 = por %p109, %p110
      %p112 = scmp.ne.s32.totalorder %s104, %s107
      %p113 = scmp.eq.s32.totalorder %s24, 0
      %p114 = por %p112, %p113
      %p115 = scmp.ne.s32.totalorder %s104, %s107
      %p116 = scmp.eq.s32.totalorder %s29, 7
      %p117 = por %p115, %p116
      %p118 = scmp.ne.s32.totalorder %s107, %s108
      %p119 = scmp.eq.s32.totalorder %s29, 0
      %p120 = por %p118, %p119
      %p121 = scmp.ne.s32.totalorder %s107, %s108
      %p122 = scmp.eq.s32.totalorder %s30, 7
      %p123 = por %p121, %p122
      %p125 = scmp.ne.s32.totalorder %s108, %s124
      %p126 = scmp.eq.s32.totalorder %s30, 0
      %p127 = por %p125, %p126
      %s128 = ssub.s32 %s31, %s43
      %p129 = scmp.eq.s32.totalorder %s128, 0
      %s131 = sadd.s32 %s130, 1
      %s132 = scalar_select %p129, %s130, %s131
      %p135 = pneg %p129
      %p136 = scmp.eq.s32.totalorder %s24, 7
      %p137 = por %p135, %p136
      %p138 = scmp.ne.s32.totalorder %s130, %s133
      %p139 = scmp.eq.s32.totalorder %s24, 0
      %p140 = por %p138, %p139
      %p141 = scmp.ne.s32.totalorder %s130, %s133
      %p142 = scmp.eq.s32.totalorder %s29, 7
      %p143 = por %p141, %p142
      %p144 = scmp.ne.s32.totalorder %s133, %s134
      %p145 = scmp.eq.s32.totalorder %s29, 0
      %p146 = por %p144, %p145
      %p147 = scmp.ne.s32.totalorder %s133, %s134
      %p148 = scmp.eq.s32.totalorder %s30, 7
      %p149 = por %p147, %p148
      %p151 = scmp.ne.s32.totalorder %s134, %s150
      %p152 = scmp.eq.s32.totalorder %s30, 0
      %p153 = por %p151, %p152
      %s154 = ssub.s32 %s31, %s43
      %s155 = ssub.s32 %s32, %s39
      %s156 = sor.u32 %s154, %s155
      %p157 = scmp.eq.s32.totalorder %s156, 0
      %s159 = sadd.s32 %s158, 1
      %s160 = scalar_select %p157, %s158, %s159
      %p163 = pneg %p157
      %p164 = scmp.eq.s32.totalorder %s24, 7
      %p165 = por %p163, %p164
      %p166 = scmp.ne.s32.totalorder %s158, %s161
      %p167 = scmp.eq.s32.totalorder %s24, 0
      %p168 = por %p166, %p167
      %p169 = scmp.ne.s32.totalorder %s158, %s161
      %p170 = scmp.eq.s32.totalorder %s29, 7
      %p171 = por %p169, %p170
      %p172 = scmp.ne.s32.totalorder %s161, %s162
      %p173 = scmp.eq.s32.totalorder %s29, 0
      %p174 = por %p172, %p173
      %p175 = scmp.ne.s32.totalorder %s161, %s162
      %p176 = scmp.eq.s32.totalorder %s30, 7
      %p177 = por %p175, %p176
      %p179 = scmp.ne.s32.totalorder %s162, %s178
      %p180 = scmp.eq.s32.totalorder %s30, 0
      %p181 = por %p179, %p180
      %s182 = ssub.s32 %s31, %s43
      %s183 = ssub.s32 %s32, %s39
      %s184 = sor.u32 %s182, %s183
      %p185 = scmp.eq.s32.totalorder %s184, 0
      %s187 = sadd.s32 %s186, 1
      %s188 = scalar_select %p185, %s186, %s187
      %p191 = pneg %p185
      %p192 = scmp.eq.s32.totalorder %s24, 7
      %p193 = por %p191, %p192
      %p194 = scmp.ne.s32.totalorder %s186, %s189
      %p195 = scmp.eq.s32.totalorder %s24, 0
      %p196 = por %p194, %p195
      %p197 = scmp.ne.s32.totalorder %s186, %s189
      %p198 = scmp.eq.s32.totalorder %s29, 7
      %p199 = por %p197, %p198
      %p200 = scmp.ne.s32.totalorder %s189, %s190
      %p201 = scmp.eq.s32.totalorder %s29, 0
      %p202 = por %p200, %p201
      %p203 = scmp.ne.s32.totalorder %s189, %s190
      %p204 = scmp.eq.s32.totalorder %s30, 7
      %p205 = por %p203, %p204
      %p207 = scmp.ne.s32.totalorder %s190, %s206
      %p208 = scmp.eq.s32.totalorder %s30, 0
      %p209 = por %p207, %p208
      %p210 = scmp.le.s32.totalorder 1, %s24
      %p211 = scmp.lt.s32.totalorder %s24, 9
      %p212 = pnand %p210, %p211
      %p213 = pneg %p212
      // Predicated region
      $region9: #{tpu_custom_call.1} parent=5 // pred_check
        _
      $region10: #{tpu_custom_call.1} parent=5 // pred_check_branch
        %215 = sbr.rel (%p212) target = $region12
      $region11: #{tpu_custom_call.1} parent=5 // pred_region
        %s216 = ssub.s32 %s24, 1
      $region12: #{tpu_custom_call.1} parent=5 // pred_fallthru
        _
      %p217 = scmp.lt.s32.totalorder %s24, 8
      // Predicated region
      $region13: #{tpu_custom_call.1} parent=5 // pred_check
        %p218 = pneg %p217
      $region14: #{tpu_custom_call.1} parent=5 // pred_check_branch
        %220 = sbr.rel (%p218) target = $region16
      $region15: #{tpu_custom_call.1} parent=5 // pred_region
        // Predicated region
        $region17: #{tpu_custom_call.1} parent=15 // pred_check
          %p221 = pneg %p58
        $region18: #{tpu_custom_call.1} parent=15 // pred_check_branch
          %223 = sbr.rel (%p221) target = $region20
        $region19: #{tpu_custom_call.1} parent=15 // pred_region
          %s224 = sand.u32 %s48, 1
          %s225 = scalar_lea.sflag [#allocation3], %s224
          %s226 = sand.u32 %s48, 1
          %s227 = smul.addr %s226, 8
          %s228 = scalar_lea.vmem [#allocation2], %s227
          %s230 = ssub.s32 128, 128
          %231 = vsyncadd %s225, %s230
          %s232 = smul.addr %s31, 4
          %s233 = sadd.s32 %s32, %s232
          %s234 = smul.addr %s233, 128
          %s235 = scalar_lea.hbm %s0, %s234
          %s237 = sshll.u32 %s228, 4
          %s238 = int_to_ptr.vmem [resolvable:$true] %s237
          %240 = dma.hbm_to_vmem [thread:$0]  %s235, 128, %s238, %s225
        $region20: #{tpu_custom_call.1} parent=15 // pred_fallthru
          _
        // Predicated region
        $region21: #{tpu_custom_call.1} parent=15 // pred_check
          %p241 = pneg %p86
        $region22: #{tpu_custom_call.1} parent=15 // pred_check_branch
          %243 = sbr.rel (%p241) target = $region24
        $region23: #{tpu_custom_call.1} parent=15 // pred_region
          %s244 = sand.u32 %s24, 1
          %s245 = scalar_lea.sflag [#allocation6], %s244
          %s246 = sand.u32 %s76, 1
          %s247 = smul.addr %s246, 8
          %s248 = scalar_lea.vmem [#allocation5], %s247
          %s250 = ssub.s32 128, 128
          %251 = vsyncadd %s245, %s250
          %s252 = smul.addr %s31, 4
          %s253 = sadd.s32 %s32, %s252
          %s254 = smul.addr %s253, 128
          %s255 = scalar_lea.hbm %s1, %s254
          %s257 = sshll.u32 %s248, 4
          %s258 = int_to_ptr.vmem [resolvable:$true] %s257
          %260 = dma.hbm_to_vmem [thread:$0]  %s255, 128, %s258, %s245
        $region24: #{tpu_custom_call.1} parent=15 // pred_fallthru
          _
        // Predicated region
        $region25: #{tpu_custom_call.1} parent=15 // pred_check
          %p261 = pneg %p114
        $region26: #{tpu_custom_call.1} parent=15 // pred_check_branch
          %263 = sbr.rel (%p261) target = $region28
        $region27: #{tpu_custom_call.1} parent=15 // pred_region
          %s264 = sand.u32 %s24, 1
          %s265 = scalar_lea.sflag [#allocation6], %s264
          %s266 = sand.u32 %s104, 1
          %s267 = smul.addr %s266, 8
          %s268 = scalar_lea.vmem [#allocation7], %s267
          %s270 = ssub.s32 128, 128
          %271 = vsyncadd %s265, %s270
          %s272 = smul.addr %s31, 4
          %s273 = sadd.s32 %s32, %s272
          %s274 = smul.addr %s273, 128
          %s275 = scalar_lea.hbm %s2, %s274
          %s277 = sshll.u32 %s268, 4
          %s278 = int_to_ptr.vmem [resolvable:$true] %s277
          %280 = dma.hbm_to_vmem [thread:$0]  %s275, 128, %s278, %s265
        $region28: #{tpu_custom_call.1} parent=15 // pred_fallthru
          _
        // Predicated region
        $region29: #{tpu_custom_call.1} parent=15 // pred_check
          %p281 = pneg %p140
        $region30: #{tpu_custom_call.1} parent=15 // pred_check_branch
          %283 = sbr.rel (%p281) target = $region32
        $region31: #{tpu_custom_call.1} parent=15 // pred_region
          %p284 = scmp.lt.s32.totalorder %s31, 1
          %s285 = scalar_select %p284, %s31, 1
          %s286 = smul.addr %s285, 2
          %s287 = scalar_lea.vmem %s3, %s286
        $region32: #{tpu_custom_call.1} parent=15 // pred_fallthru
          _
      $region16: #{tpu_custom_call.1} parent=5 // pred_fallthru
        _
      %p288 = scmp.le.s32.totalorder 1, %s24
      %p289 = scmp.lt.s32.totalorder %s24, 9
      %p290 = pnand %p288, %p289
      %p291 = pneg %p290
      // Predicated region
      $region33: #{tpu_custom_call.1} parent=5 // pred_check
        _
      $region34: #{tpu_custom_call.1} parent=5 // pred_check_branch
        %293 = sbr.rel (%p290) target = $region36
      $region35: #{tpu_custom_call.1} parent=5 // pred_region
        %s294 = ssub.s32 %s24, 1
        %s295 = sand.u32 %s51, 1
        %s296 = scalar_lea.sflag [#allocation3], %s295
        %s297 = sand.u32 %s51, 1
        %s298 = smul.addr %s297, 8
        %s299 = scalar_lea.vmem [#allocation2], %s298
        // Predicated region
        $region37: #{tpu_custom_call.1} parent=35 // pred_check
          %p300 = pneg %p64
        $region38: #{tpu_custom_call.1} parent=35 // pred_check_branch
          %302 = sbr.rel (%p300) target = $region40
        $region39: #{tpu_custom_call.1} parent=35 // pred_region
          %303 = dma.done %s296, 128
        $region40: #{tpu_custom_call.1} parent=35 // pred_fallthru
          _
        %s304 = sand.u32 %s29, 1
        %s305 = scalar_lea.sflag [#allocation6], %s304
        %s306 = sand.u32 %s79, 1
        %s307 = smul.addr %s306, 8
        %s308 = scalar_lea.vmem [#allocation5], %s307
        // Predicated region
        $region41: #{tpu_custom_call.1} parent=35 // pred_check
          %p309 = pneg %p92
        $region42: #{tpu_custom_call.1} parent=35 // pred_check_branch
          %311 = sbr.rel (%p309) target = $region44
        $region43: #{tpu_custom_call.1} parent=35 // pred_region
          %312 = dma.done %s305, 128
        $region44: #{tpu_custom_call.1} parent=35 // pred_fallthru
          _
        %s313 = sand.u32 %s29, 1
        %s314 = scalar_lea.sflag [#allocation6], %s313
        %s315 = sand.u32 %s107, 1
        %s316 = smul.addr %s315, 8
        %s317 = scalar_lea.vmem [#allocation7], %s316
        // Predicated region
        $region45: #{tpu_custom_call.1} parent=35 // pred_check
          %p318 = pneg %p120
        $region46: #{tpu_custom_call.1} parent=35 // pred_check_branch
          %320 = sbr.rel (%p318) target = $region48
        $region47: #{tpu_custom_call.1} parent=35 // pred_region
          %321 = dma.done %s314, 128
        $region48: #{tpu_custom_call.1} parent=35 // pred_fallthru
          _
        %s322 = sand.u32 %s51, 1
        %s323 = scalar_lea.sflag [#allocation3], %s322
        %s324 = sand.u32 %s51, 1
        %s325 = smul.addr %s324, 8
        %s326 = scalar_lea.vmem [#allocation2], %s325
        %p327 = pneg %p64
        %p328 = pneg %p61
        %s329 = sand.u32 %s29, 1
        %s330 = scalar_lea.sflag [#allocation6], %s329
        %s331 = sand.u32 %s79, 1
        %s332 = smul.addr %s331, 8
        %s333 = scalar_lea.vmem [#allocation5], %s332
        %p334 = pneg %p92
        %p335 = pneg %p89
        %s336 = sand.u32 %s29, 1
        %s337 = scalar_lea.sflag [#allocation6], %s336
        %s338 = sand.u32 %s107, 1
        %s339 = smul.addr %s338, 8
        %s340 = scalar_lea.vmem [#allocation7], %s339
        %p341 = pneg %p120
        %p342 = pneg %p117
        %p343 = scmp.lt.s32.totalorder %s33, 1
        %s344 = scalar_select %p343, %s33, 1
        %s345 = smul.addr %s344, 2
        %s346 = scalar_lea.vmem %s3, %s345
        %p347 = pneg %p146
        %p348 = pneg %p143
        %p349 = pneg %p174
        %p350 = pneg %p171
        %s351 = sand.u32 %s161, 1
        %s352 = scalar_lea.sflag [#allocation4], %s351
        %s353 = sand.u32 %s161, 1
        %s354 = smul.addr %s353, 8
        %s355 = scalar_lea.vmem [#allocation8], %s354
        %p356 = pneg %p202
        %p357 = pneg %p199
        %s358 = sand.u32 %s189, 1
        %s359 = scalar_lea.sflag [#allocation10], %s358
        %s360 = sand.u32 %s189, 1
        %s361 = smul.addr %s360, 8
        %s362 = scalar_lea.vmem [#allocation9], %s361
        %p363 = scmp.lt.s32.totalorder %s33, 1
        %s364 = scalar_select %p363, %s33, 1
        %s365 = smul.addr %s364, 2
        %s366 = scalar_lea.vmem %s3, %s365
        %v369 = vld [vmem:[%s299] sm:$0xff]
        %v370 = vmul.f32 %v369, 0.35355338
        %v371 = vld [vmem:[%s308] sm:$0xff]
        %v372 = vld [vmem:[%s317] sm:$0xff]
        %v373 = vld [vmem:[%s366] sm:$0x3]
        %vm374 = vnez %v373
        %vm375 = vcmask 64512
        %v377 = vsel %vm375, %v370, 0
        %v380 = vsel %vm375, %v371, 0
        %382 = vmatprep.subr.mxu0 0.0
        %383 = vmatpush1.xpose.msra.mxu0 %v380
        %384 = vmatprep.subr.mxu0 0.0
        %385 = vmatpush1.xpose.msra.mxu0 0.0
        %386 = vmatprep.subr.mxu0 0.0
        %387 = vmatpush1.xpose.msra.mxu0 0.0
        %388 = vmatprep.subr.mxu0 0.0
        %389 = vmatpush1.xpose.msra.mxu0 0.0
        %390 = vmatprep.subr.mxu0 0.0
        %391 = vmatpush1.xpose.msra.mxu0 0.0
        %392 = vmatprep.subr.mxu0 0.0
        %393 = vmatpush1.xpose.msra.mxu0 0.0
        %394 = vmatprep.subr.mxu0 0.0
        %395 = vmatpush1.xpose.msra.mxu0 0.0
        %396 = vmatprep.subr.mxu0 0.0
        %397 = vmatpush1.xpose.msra.mxu0 0.0
        %398 = vmatprep.subr.mxu0 0.0
        %399 = vmatpush1.xpose.msra.mxu0 0.0
        %400 = vmatprep.subr.mxu0 0.0
        %401 = vmatpush1.xpose.msra.mxu0 0.0
        %402 = vmatprep.subr.mxu0 0.0
        %403 = vmatpush1.xpose.msra.mxu0 0.0
        %404 = vmatprep.subr.mxu0 0.0
        %405 = vmatpush1.xpose.msra.mxu0 0.0
        %406 = vmatprep.subr.mxu0 0.0
        %407 = vmatpush1.xpose.msra.mxu0 0.0
        %408 = vmatprep.subr.mxu0 0.0
        %409 = vmatpush1.xpose.msra.mxu0 0.0
        %410 = vmatprep.subr.mxu0 0.0
        %411 = vmatpush1.xpose.msra.mxu0 0.0
        %412 = vmatprep.subr.mxu0 0.0
        %413 = vmatpush1.xpose.msra.mxu0 0.0
        %414 = vmatprep.subr.mxu0 0.0
        %415 = vmatpush1.xpose.msra.mxu0 0.0
        %416 = vmatprep.subr.mxu0 0.0
        %417 = vmatpush1.xpose.msra.mxu0 0.0
        %418 = vmatprep.subr.mxu0 0.0
        %419 = vmatpush1.xpose.msra.mxu0 0.0
        %420 = vmatprep.subr.mxu0 0.0
        %421 = vmatpush1.xpose.msra.mxu0 0.0
        %422 = vmatprep.subr.mxu0 0.0
        %423 = vmatpush1.xpose.msra.mxu0 0.0
        %424 = vmatprep.subr.mxu0 0.0
        %425 = vmatpush1.xpose.msra.mxu0 0.0
        %426 = vmatprep.subr.mxu0 0.0
        %427 = vmatpush1.xpose.msra.mxu0 0.0
        %428 = vmatprep.subr.mxu0 0.0
        %429 = vmatpush1.xpose.msra.mxu0 0.0
        %430 = vmatprep.subr.mxu0 0.0
        %431 = vmatpush1.xpose.msra.mxu0 0.0
        %432 = vmatprep.subr.mxu0 0.0
        %433 = vmatpush1.xpose.msra.mxu0 0.0
        %434 = vmatprep.subr.mxu0 0.0
        %435 = vmatpush1.xpose.msra.mxu0 0.0
        %436 = vmatprep.subr.mxu0 0.0
        %437 = vmatpush1.xpose.msra.mxu0 0.0
        %438 = vmatprep.subr.mxu0 0.0
        %439 = vmatpush1.xpose.msra.mxu0 0.0
        %440 = vmatprep.subr.mxu0 0.0
        %441 = vmatpush1.xpose.msra.mxu0 0.0
        %442 = vmatprep.subr.mxu0 0.0
        %443 = vmatpush1.xpose.msra.mxu0 0.0
        %444 = vmatprep.subr.mxu0 0.0
        %445 = vmatpush1.xpose.msra.mxu0 0.0
        %446 = vmatprep.mubr.f32.mxu0 0.0
        %447 = vmatmul.mubr.f32.gmra.mrb[0].mxu0 %v377
        %v448 = vpop.f32.mrb[0].mxu0
        %v449 = vadd.f32 0.0, %v448
        %v450 = vpop.f32.mrb[0].mxu0
        %451 = vdwg.mxu0
        %v452 = vsel %vm374, 16843009, 0
        %v453 = vunpack.c.0.s8 %v452
        %vm454 = vcmp.ne.s32.totalorder %v453, 0
        %v455 = vsel %vm454, -1e+09, %v449
        %v456 = vsel %vm375, %v455, -inf
        %457 = vmax.xlane.f32.xlu0 %v456
        %v458 = vpop.xlane.xlu0 %457
        %v459 = vsub.f32 %v455, %v458
        %v460 = vmul.f32 %v459, 1.442695
        %v461 = vpow.pop %v460
        %v462 = vsel %vm375, %v461, 0.0
        %463 = vadd.xlane.f32.xlu0 %v462
        %v464 = vpop.xlane.xlu0 %463
        %v465 = vrcp.pop %v464
        %v466 = vmul.f32 %v461, %v465
        %v468 = vsel %vm375, %v466, 0
        %470 = vmatprep.subr.mxu0 0.0
        %471 = vmatpush1.msra.mxu0 %v372
        %472 = vmatprep.subr.mxu0 0.0
        %473 = vmatpush1.msra.mxu0 0.0
        %474 = vmatprep.subr.mxu0 0.0
        %475 = vmatpush1.msra.mxu0 0.0
        %476 = vmatprep.subr.mxu0 0.0
        %477 = vmatpush1.msra.mxu0 0.0
        %478 = vmatprep.subr.mxu0 0.0
        %479 = vmatpush1.msra.mxu0 0.0
        %480 = vmatprep.subr.mxu0 0.0
        %481 = vmatpush1.msra.mxu0 0.0
        %482 = vmatprep.subr.mxu0 0.0
        %483 = vmatpush1.msra.mxu0 0.0
        %484 = vmatprep.subr.mxu0 0.0
        %485 = vmatpush1.msra.mxu0 0.0
        %486 = vmatprep.subr.mxu0 0.0
        %487 = vmatpush1.msra.mxu0 0.0
        %488 = vmatprep.subr.mxu0 0.0
        %489 = vmatpush1.msra.mxu0 0.0
        %490 = vmatprep.subr.mxu0 0.0
        %491 = vmatpush1.msra.mxu0 0.0
        %492 = vmatprep.subr.mxu0 0.0
        %493 = vmatpush1.msra.mxu0 0.0
        %494 = vmatprep.subr.mxu0 0.0
        %495 = vmatpush1.msra.mxu0 0.0
        %496 = vmatprep.subr.mxu0 0.0
        %497 = vmatpush1.msra.mxu0 0.0
        %498 = vmatprep.subr.mxu0 0.0
        %499 = vmatpush1.msra.mxu0 0.0
        %500 = vmatprep.subr.mxu0 0.0
        %501 = vmatpush1.msra.mxu0 0.0
        %502 = vmatprep.subr.mxu0 0.0
        %503 = vmatpush1.msra.mxu0 0.0
        %504 = vmatprep.subr.mxu0 0.0
        %505 = vmatpush1.msra.mxu0 0.0
        %506 = vmatprep.subr.mxu0 0.0
        %507 = vmatpush1.msra.mxu0 0.0
        %508 = vmatprep.subr.mxu0 0.0
        %509 = vmatpush1.msra.mxu0 0.0
        %510 = vmatprep.subr.mxu0 0.0
        %511 = vmatpush1.msra.mxu0 0.0
        %512 = vmatprep.subr.mxu0 0.0
        %513 = vmatpush1.msra.mxu0 0.0
        %514 = vmatprep.subr.mxu0 0.0
        %515 = vmatpush1.msra.mxu0 0.0
        %516 = vmatprep.subr.mxu0 0.0
        %517 = vmatpush1.msra.mxu0 0.0
        %518 = vmatprep.subr.mxu0 0.0
        %519 = vmatpush1.msra.mxu0 0.0
        %520 = vmatprep.subr.mxu0 0.0
        %521 = vmatpush1.msra.mxu0 0.0
        %522 = vmatprep.subr.mxu0 0.0
        %523 = vmatpush1.msra.mxu0 0.0
        %524 = vmatprep.subr.mxu0 0.0
        %525 = vmatpush1.msra.mxu0 0.0
        %526 = vmatprep.subr.mxu0 0.0
        %527 = vmatpush1.msra.mxu0 0.0
        %528 = vmatprep.subr.mxu0 0.0
        %529 = vmatpush1.msra.mxu0 0.0
        %530 = vmatprep.subr.mxu0 0.0
        %531 = vmatpush1.msra.mxu0 0.0
        %532 = vmatprep.subr.mxu0 0.0
        %533 = vmatpush1.msra.mxu0 0.0
        %534 = vmatprep.mubr.f32.mxu0 0.0
        %535 = vmatmul.mubr.f32.gmra.mrb[0].mxu0 %v468
        %v536 = vpop.f32.mrb[0].mxu0
        %v537 = vadd.f32 0.0, %v536
        %v538 = vpop.f32.mrb[0].mxu0
        %539 = vdwg.mxu0
        %540 = vst.msk [vmem:[%s355] sm:$0xff] %vm375, %v537
        %541 = vst.msk [vmem:[%s362] sm:$0xff] %vm375, %v466
        %s542 = sand.u32 %s161, 1
        %s543 = scalar_lea.sflag [#allocation4], %s542
        %s544 = sand.u32 %s161, 1
        %s545 = smul.addr %s544, 8
        %s546 = scalar_lea.vmem [#allocation8], %s545
        %s547 = sand.u32 %s189, 1
        %s548 = scalar_lea.sflag [#allocation10], %s547
        %s549 = sand.u32 %s189, 1
        %s550 = smul.addr %s549, 8
        %s551 = scalar_lea.vmem [#allocation9], %s550
        // Predicated region
        $region49: #{tpu_custom_call.1} parent=35 // pred_check
          %p552 = pneg %p171
        $region50: #{tpu_custom_call.1} parent=35 // pred_check_branch
          %554 = sbr.rel (%p552) target = $region52
        $region51: #{tpu_custom_call.1} parent=35 // pred_region
          %s556 = ssub.s32 128, 128
          %557 = vsyncadd %s543, %s556
          %s558 = smul.addr %s33, 4
          %s559 = sadd.s32 %s34, %s558
          %s560 = smul.addr %s559, 128
          %s561 = scalar_lea.hbm %s4, %s560
          %s563 = sshll.u32 %s546, 4
          %s564 = int_to_ptr.vmem [resolvable:$true] %s563
          %566 = dma.vmem_to_hbm [thread:$0]  %s564, 128, %s561, %s543
        $region52: #{tpu_custom_call.1} parent=35 // pred_fallthru
          _
        // Predicated region
        $region53: #{tpu_custom_call.1} parent=35 // pred_check
          %p567 = pneg %p199
        $region54: #{tpu_custom_call.1} parent=35 // pred_check_branch
          %569 = sbr.rel (%p567) target = $region56
        $region55: #{tpu_custom_call.1} parent=35 // pred_region
          %s571 = ssub.s32 128, 128
          %572 = vsyncadd %s548, %s571
          %s573 = smul.addr %s33, 4
          %s574 = sadd.s32 %s34, %s573
          %s575 = smul.addr %s574, 128
          %s576 = scalar_lea.hbm %s5, %s575
          %s578 = sshll.u32 %s551, 4
          %s579 = int_to_ptr.vmem [resolvable:$true] %s578
          %581 = dma.vmem_to_hbm [thread:$0]  %s579, 128, %s576, %s548
        $region56: #{tpu_custom_call.1} parent=35 // pred_fallthru
          _
      $region36: #{tpu_custom_call.1} parent=5 // pred_fallthru
        _
      %p582 = scmp.le.s32.totalorder 2, %s24
      // Predicated region
      $region57: #{tpu_custom_call.1} parent=5 // pred_check
        %p583 = pneg %p582
      $region58: #{tpu_custom_call.1} parent=5 // pred_check_branch
        %585 = sbr.rel (%p583) target = $region60
      $region59: #{tpu_custom_call.1} parent=5 // pred_region
        %s586 = ssub.s32 %s24, 2
        // Predicated region
        $region61: #{tpu_custom_call.1} parent=59 // pred_check
          %p587 = pneg %p177
        $region62: #{tpu_custom_call.1} parent=59 // pred_check_branch
          %589 = sbr.rel (%p587) target = $region64
        $region63: #{tpu_custom_call.1} parent=59 // pred_region
          %s590 = sand.u32 %s162, 1
          %s591 = scalar_lea.sflag [#allocation4], %s590
          %s592 = sand.u32 %s162, 1
          %s593 = smul.addr %s592, 8
          %s594 = scalar_lea.vmem [#allocation8], %s593
          %595 = dma.done %s591, 128
        $region64: #{tpu_custom_call.1} parent=59 // pred_fallthru
          _
        // Predicated region
        $region65: #{tpu_custom_call.1} parent=59 // pred_check
          %p596 = pneg %p205
        $region66: #{tpu_custom_call.1} parent=59 // pred_check_branch
          %598 = sbr.rel (%p596) target = $region68
        $region67: #{tpu_custom_call.1} parent=59 // pred_region
          %s599 = sand.u32 %s190, 1
          %s600 = scalar_lea.sflag [#allocation10], %s599
          %s601 = sand.u32 %s190, 1
          %s602 = smul.addr %s601, 8
          %s603 = scalar_lea.vmem [#allocation9], %s602
          %604 = dma.done %s600, 128
        $region68: #{tpu_custom_call.1} parent=59 // pred_fallthru
          _
      $region60: #{tpu_custom_call.1} parent=5 // pred_fallthru
        _
    $region6: #{tpu_custom_call.1} parent=1 // loop_footer
      %s28 = sadd.s32 1, %s24
    $region7: #{tpu_custom_call.1} parent=1 // loop_footer_branch
      %23 = sbr.rel target = $region3
    $region8: #{tpu_custom_call.1} parent=1 // loop_exit
      _
    %605 = vsyncpa [#allocation3], 1
    %s606 = scalar_lea.sflag [#allocation3], 1
    %607 = vsyncpa %s606, 1
    %608 = vsyncpa [#allocation6], 1
    %s609 = scalar_lea.sflag [#allocation6], 1
    %610 = vsyncpa %s609, 1
    %611 = vsyncpa [#allocation4], 1
    %s612 = scalar_lea.sflag [#allocation4], 1
    %613 = vsyncpa %s612, 1
    %614 = vsyncpa [#allocation10], 1
    %s615 = scalar_lea.sflag [#allocation10], 1
    %616 = vsyncpa %s615, 1

</llo_original>
